<compile_context>
chip_gen: v7x
topology: tpu7x:2x2x1
jax: 0.10.0
libtpu: 0.0.40
codegen_flags: <defaults>
</compile_context>

<pallas_src>
import math

import jax
import jax.numpy as jnp
import numpy as np
from jax.experimental import pallas as pl
from jax.experimental.pallas import tpu as pltpu

LANE = 128
SUBLANE = 8
VMEM_BUDGET = 36 * 1024 * 1024  # selection budget; final cap stays <= 48 MiB (v7x safe)


def _round_up(v, m):
    return ((v + m - 1) // m) * m


def _cdiv(a, b):
    return -(-a // b)


# ----------------------------------------------------------------------------
# Pallas kernel: one N tile, all dims at once (block-diagonal formulation).
#   refs = (feat, w0[, b0], w1[, b1], ..., wL[, bL], out)
#   feat: (2, T) rows = cos(pi x), sin(pi x)
#   w0  : (dim*n0, 2) stacked first-layer matrix acting on the shared cos/sin rows
#   wl  : (dim*n_out_l, dim*n_in_l) block-diagonal weights, bl: (dim*n_out_l, 1)
#   out : (dim*p, T)
# ----------------------------------------------------------------------------
def make_tnn_kernel(n_layers, has_bias, use_bf16_hidden=False):
    hid_dt = jnp.bfloat16 if use_bf16_hidden else jnp.float32

    def kernel(*refs):
        feat_ref = refs[0]
        out_ref = refs[-1]
        params = refs[1:-1]
        it = iter(params)

        feat = feat_ref[...]                    # (2, T) f32
        cos_r = feat[0:1, :]
        sin_r = feat[1:2, :]

        # Layer 0: contraction dim K == 2 -> VPU broadcast multiply-add (skip MXU).
        w0 = next(it)[...]                      # (R0, 2)
        h = w0[:, 0:1] * cos_r + w0[:, 1:2] * sin_r
        if has_bias[0]:
            h = h + next(it)[...]               # (R0, 1)
        if n_layers > 1:
            h = jnp.tanh(h)

        # Layers 1..L-1: block-diagonal matmuls over all dims at once (MXU).
        for l in range(1, n_layers):
            w = next(it)[...]                   # (R_out, R_in)
            if use_bf16_hidden:
                h = jnp.dot(w.astype(hid_dt), h.astype(hid_dt),
                            preferred_element_type=jnp.float32)
            else:
                h = jnp.dot(w, h, preferred_element_type=jnp.float32)
            if has_bias[l]:
                h = h + next(it)[...]           # (R_out, 1)
            if l < n_layers - 1:
                h = jnp.tanh(h)

        out_ref[...] = h.astype(out_ref.dtype)

    return kernel


# ----------------------------------------------------------------------------
# Helpers: tiling choice + VMEM estimate + block-diagonal packing.
# ----------------------------------------------------------------------------
def _pick_tiling(N, target_lanes):
    """Tile the quadrature axis with bounded padding waste and >=2 blocks when possible."""
    M = _round_up(N, LANE) // LANE              # number of 128-lane columns
    t_target = max(1, target_lanes // LANE)
    num_tiles = _cdiv(M, t_target)
    num_tiles = max(num_tiles, min(2, M))       # keep >=2 blocks for v7x dual TensorCores
    tile_t = _cdiv(M, num_tiles)
    num_tiles = _cdiv(M, tile_t)                # avoid an empty trailing tile
    tile_N = tile_t * LANE
    N_pad = tile_N * num_tiles
    return tile_N, N_pad, num_tiles


def _estimate_vmem_bytes(tile_N, row_counts, param_bytes, out_rows):
    feat_b = 2 * 2 * tile_N * 4                 # double-buffered feature tile
    out_b = 2 * out_rows * tile_N * 4           # double-buffered output tile
    par_b = 2 * param_bytes                     # parameter blocks (2 pipeline slots)
    act_b = 3 * max(row_counts) * tile_N * 4    # live intermediates + headroom
    return feat_b + out_b + par_b + act_b


def _block_diag(w):
    """(dim, n_out, n_in) -> (dim*n_out, dim*n_in) block-diagonal."""
    d, no, ni = w.shape
    eye = jnp.eye(d, dtype=w.dtype)
    return (eye[:, None, :, None] * w[:, :, None, :]).reshape(d * no, d * ni)


# ----------------------------------------------------------------------------
# Wrapper: equivalent of TNN.forward(w, x, need_grad=0).
# ----------------------------------------------------------------------------
def tnn_forward(ws, bs, w_quad, x, dim, size, *, tile_n=4096, use_bf16_hidden=False):
    del w_quad  # quadrature weights are not used in the forward pass
    N = int(x.shape[0])
    p = abs(size[-1])
    layer_dims = [(abs(size[i]), abs(size[i - 1])) for i in range(1, len(size))]
    has_bias = [size[i] > 0 for i in range(1, len(size))]
    n_layers = len(layer_dims)

    # Structural checks mirroring torch broadcast semantics of TNN_Linear.
    n_out0, n_in0 = layer_dims[0]
    if n_in0 == 1:
        assert n_out0 == 2, "first layer with in_features=1 must have out_features=2 (cos/sin rows)"
    else:
        assert n_in0 == 2, f"first layer in_features {n_in0} != 2 (cos/sin rows)"
    prev = n_out0
    for l in range(1, n_layers):
        n_out, n_in = layer_dims[l]
        assert n_in == prev and n_in > 1, f"layer {l}: in_features {n_in} != previous out {prev}"
        prev = n_out
    assert prev == p

    # Row counts of the collapsed (block-diagonal) formulation.
    row_counts = [2] + [dim * n_out for (n_out, _) in layer_dims]
    out_rows = dim * p
    param_floats = dim * n_out0 * 2 + (dim * n_out0 if has_bias[0] else 0)
    for l in range(1, n_layers):
        n_out, n_in = layer_dims[l]
        param_floats += (dim * n_out) * (dim * n_in) + (dim * n_out if has_bias[l] else 0)
    param_bytes = param_floats * 4

    # Tile selection: large lane tiles to amortize the ~0.35us per-grid-step cost,
    # shrunk only if the VMEM estimate exceeds the budget.
    target = max(LANE, int(tile_n))
    while True:
        tile_N, N_pad, num_tiles = _pick_tiling(N, target)
        est = _estimate_vmem_bytes(tile_N, row_counts, param_bytes, out_rows)
        if est <= VMEM_BUDGET or tile_N == LANE:
            break
        target = max(LANE, target // 2)
    vmem_limit = int(min(max(est + (4 << 20), 16 << 20), 48 << 20))

    # Precompute lane-dense cos/sin feature rows (padded columns are harmless, sliced off).
    x_pad = jnp.zeros((N_pad,), jnp.float32).at[:N].set(x.astype(jnp.float32))
    feat = jnp.stack([jnp.cos(jnp.pi * x_pad), jnp.sin(jnp.pi * x_pad)], axis=0)  # (2, N_pad)

    # ---- Pack parameters for the collapsed-dim formulation ----
    # Layer 0 acts on the SHARED (2, T) cos/sin rows -> stacked (dim*n0, 2) matrix.
    if n_in0 == 1:
        # elementwise layer: diagonal 2x2 block per dim, embedded into a (dim*2, 2) matrix
        w0_stack = jnp.zeros((dim * 2, 2), jnp.float32)
        w0_stack = w0_stack.at[0::2, 0].set(ws[0][:, 0, 0].astype(jnp.float32))
        w0_stack = w0_stack.at[1::2, 1].set(ws[0][:, 1, 0].astype(jnp.float32))
    else:
        w0_stack = ws[0].astype(jnp.float32).reshape(dim * n_out0, 2)

    inputs = [feat]
    in_specs = [pl.BlockSpec((2, tile_N), lambda nt: (0, nt))]

    def _const_spec(arr):
        idx = (0,) * arr.ndim
        return pl.BlockSpec(arr.shape, lambda nt, _idx=idx: _idx)

    inputs.append(w0_stack)
    in_specs.append(_const_spec(w0_stack))
    if has_bias[0]:
        b0 = bs[0].astype(jnp.float32).reshape(dim * n_out0, 1)
        inputs.append(b0)
        in_specs.append(_const_spec(b0))

    for l in range(1, n_layers):
        n_out, n_in = layer_dims[l]
        wbd = _block_diag(ws[l].astype(jnp.float32))          # (dim*n_out, dim*n_in)
        inputs.append(wbd)
        in_specs.append(_const_spec(wbd))
        if has_bias[l]:
            bl = bs[l].astype(jnp.float32).reshape(dim * n_out, 1)
            inputs.append(bl)
            in_specs.append(_const_spec(bl))

    kernel = make_tnn_kernel(n_layers, has_bias, use_bf16_hidden=use_bf16_hidden)

    phi_flat = pl.pallas_call(
        kernel,
        out_shape=jax.ShapeDtypeStruct((out_rows, N_pad), jnp.float32),
        grid=(num_tiles,),
        in_specs=in_specs,
        out_specs=pl.BlockSpec((out_rows, tile_N), lambda nt: (0, nt)),
        compiler_params=pltpu.CompilerParams(
            dimension_semantics=("parallel",),
            vmem_limit_bytes=vmem_limit,
        ),
    )(*inputs)

    # (dim*p, N_pad) -> (dim, p, N)
    return phi_flat[:, :N].reshape(dim, p, N)


# ----------------------------------------------------------------------------
# Pure-JAX reference (mirrors the PyTorch module exactly) for a sanity check.
# ----------------------------------------------------------------------------
def tnn_reference(ws, bs, x, size):
    layer_dims = [(abs(size[i]), abs(size[i - 1])) for i in range(1, len(size))]
    has_bias = [size[i] > 0 for i in range(1, len(size))]
    h = jnp.stack([jnp.cos(jnp.pi * x), jnp.sin(jnp.pi * x)], 0)  # (2, N)
    L = len(layer_dims)
    for l, (n_out, n_in) in enumerate(layer_dims):
        if n_in == 1:
            y = ws[l] * h
        else:
            y = jnp.matmul(ws[l], h)
        if has_bias[l]:
            y = y + bs[l]
        if l < L - 1:
            y = jnp.tanh(y)
        h = y
    return h


# ----------------------------------------------------------------------------
# Deterministic parameter init (xavier_normal_ per dim slice, scaled by
# size[-1]**(1/len(size)); biases = 0; scaling alpha = 1), as in TNN.__initialize.
# ----------------------------------------------------------------------------
def init_tnn_params(key, dim, size):
    layer_dims = [(abs(size[i]), abs(size[i - 1])) for i in range(1, len(size))]
    has_bias = [size[i] > 0 for i in range(1, len(size))]
    scale = abs(size[-1]) ** (1.0 / len(size))
    ws, bs = [], []
    for l, (n_out, n_in) in enumerate(layer_dims):
        key, sub = jax.random.split(key)
        std = math.sqrt(2.0 / (n_in + n_out))  # xavier_normal_, gain=1
        w = jax.random.normal(sub, (dim, n_out, n_in), jnp.float32) * std * scale
        ws.append(w)
        bs.append(jnp.zeros((dim, n_out, 1), jnp.float32) if has_bias[l] else None)
    alpha = jnp.ones((abs(size[-1]),), jnp.float32)  # TNN_Scaling.alpha (unused in fwd)
    return ws, bs, alpha


if __name__ == "__main__":
    # Small config consistent with the module: size = [1, n0, n1, ..., p]
    dim = 4                      # number of FNNs (spatial dimensions)
    size = [1, 2, 32, 32, 8]     # first layer in_features=1 (elementwise path), p=8
    N = 300                      # quadrature points (exercises tiling + padding slice)

    key = jax.random.PRNGKey(0)
    key, kx, kw = jax.random.split(key, 3)
    x = jax.random.uniform(kx, (N,), jnp.float32)        # quadrature points
    w_quad = jnp.ones((N,), jnp.float32) / N             # quadrature weights (unused)

    ws, bs, alpha = init_tnn_params(kw, dim, size)

    phi = tnn_forward(ws, bs, w_quad, x, dim, size)
    phi = jax.block_until_ready(phi)

    phi_ref = tnn_reference(ws, bs, x, size)
    assert phi.shape == (dim, abs(size[-1]), N), phi.shape
    np.testing.assert_allclose(np.asarray(phi), np.asarray(phi_ref), rtol=1e-5, atol=1e-5)

    print("KERNEL_OK")
</pallas_src>

<mosaic_0001>
module attributes {stable_mosaic.version = 11 : i64} {
  func.func @kernel(%arg0: i32, %arg1: memref<2x256xf32, #tpu.memory_space<vmem>>, %arg2: memref<8x2xf32, #tpu.memory_space<vmem>>, %arg3: memref<8x1xf32, #tpu.memory_space<vmem>>, %arg4: memref<128x8xf32, #tpu.memory_space<vmem>>, %arg5: memref<128x1xf32, #tpu.memory_space<vmem>>, %arg6: memref<128x128xf32, #tpu.memory_space<vmem>>, %arg7: memref<128x1xf32, #tpu.memory_space<vmem>>, %arg8: memref<32x128xf32, #tpu.memory_space<vmem>>, %arg9: memref<32x1xf32, #tpu.memory_space<vmem>>, %arg10: memref<32x256xf32, #tpu.memory_space<vmem>>) attributes {dimension_semantics = [#tpu.dimension_semantics<parallel>], iteration_bounds = array<i64: 2>, scalar_prefetch = 0 : i64, scratch_operands = 0 : i64, tpu.core_type = #tpu.core_type<tc>, window_params = [{transform_indices = @transform_0, window_bounds = array<i64: 2, 256>}, {pipeline_mode = #tpu.pipeline_mode<synchronous>, transform_indices = @transform_1, window_bounds = array<i64: 8, 2>}, {pipeline_mode = #tpu.pipeline_mode<synchronous>, transform_indices = @transform_2, window_bounds = array<i64: 8, 1>}, {pipeline_mode = #tpu.pipeline_mode<synchronous>, transform_indices = @transform_3, window_bounds = array<i64: 128, 8>}, {pipeline_mode = #tpu.pipeline_mode<synchronous>, transform_indices = @transform_4, window_bounds = array<i64: 128, 1>}, {pipeline_mode = #tpu.pipeline_mode<synchronous>, transform_indices = @transform_5, window_bounds = array<i64: 128, 128>}, {pipeline_mode = #tpu.pipeline_mode<synchronous>, transform_indices = @transform_6, window_bounds = array<i64: 128, 1>}, {pipeline_mode = #tpu.pipeline_mode<synchronous>, transform_indices = @transform_7, window_bounds = array<i64: 32, 128>}, {pipeline_mode = #tpu.pipeline_mode<synchronous>, transform_indices = @transform_8, window_bounds = array<i64: 32, 1>}, {transform_indices = @transform_9, window_bounds = array<i64: 32, 256>}]} {
    %c0 = arith.constant 0 : index
    %c0_0 = arith.constant 0 : index
    %0 = vector.load %arg1[%c0, %c0_0] : memref<2x256xf32, #tpu.memory_space<vmem>>, vector<2x256xf32>
    %1 = vector.extract_strided_slice %0 {offsets = [0, 0], sizes = [1, 256], strides = [1, 1]} : vector<2x256xf32> to vector<1x256xf32>
    %2 = vector.extract_strided_slice %0 {offsets = [1, 0], sizes = [1, 256], strides = [1, 1]} : vector<2x256xf32> to vector<1x256xf32>
    %c0_1 = arith.constant 0 : index
    %c0_2 = arith.constant 0 : index
    %3 = vector.load %arg2[%c0_1, %c0_2] : memref<8x2xf32, #tpu.memory_space<vmem>>, vector<8x2xf32>
    %4 = vector.extract_strided_slice %3 {offsets = [0, 0], sizes = [8, 1], strides = [1, 1]} : vector<8x2xf32> to vector<8x1xf32>
    %5 = vector.broadcast %4 : vector<8x1xf32> to vector<8x256xf32>
    %6 = vector.broadcast %1 : vector<1x256xf32> to vector<8x256xf32>
    %7 = arith.mulf %5, %6 : vector<8x256xf32>
    %8 = vector.extract_strided_slice %3 {offsets = [0, 1], sizes = [8, 1], strides = [1, 1]} : vector<8x2xf32> to vector<8x1xf32>
    %9 = vector.broadcast %8 : vector<8x1xf32> to vector<8x256xf32>
    %10 = vector.broadcast %2 : vector<1x256xf32> to vector<8x256xf32>
    %11 = arith.mulf %9, %10 : vector<8x256xf32>
    %12 = arith.addf %7, %11 : vector<8x256xf32>
    %c0_3 = arith.constant 0 : index
    %c0_4 = arith.constant 0 : index
    %13 = vector.load %arg3[%c0_3, %c0_4] : memref<8x1xf32, #tpu.memory_space<vmem>>, vector<8x1xf32>
    %14 = vector.broadcast %13 : vector<8x1xf32> to vector<8x256xf32>
    %15 = arith.addf %12, %14 : vector<8x256xf32>
    %16 = math.tanh %15 : vector<8x256xf32>
    %c0_5 = arith.constant 0 : index
    %c0_6 = arith.constant 0 : index
    %17 = vector.load %arg4[%c0_5, %c0_6] : memref<128x8xf32, #tpu.memory_space<vmem>>, vector<128x8xf32>
    %cst = arith.constant dense<0.000000e+00> : vector<128x256xf32>
    %18 = tpu.matmul %17, %16, %cst {dimension_numbers = #tpu.dot_dimension_numbers<[1], [0], [0], [1], [0, 0, 1, 1], [], []>} : vector<128x8xf32>, vector<8x256xf32>, vector<128x256xf32> -> vector<128x256xf32>
    %c0_7 = arith.constant 0 : index
    %c0_8 = arith.constant 0 : index
    %19 = vector.load %arg5[%c0_7, %c0_8] : memref<128x1xf32, #tpu.memory_space<vmem>>, vector<128x1xf32>
    %20 = vector.broadcast %19 : vector<128x1xf32> to vector<128x256xf32>
    %21 = arith.addf %18, %20 : vector<128x256xf32>
    %22 = math.tanh %21 : vector<128x256xf32>
    %c0_9 = arith.constant 0 : index
    %c0_10 = arith.constant 0 : index
    %23 = vector.load %arg6[%c0_9, %c0_10] : memref<128x128xf32, #tpu.memory_space<vmem>>, vector<128x128xf32>
    %cst_11 = arith.constant dense<0.000000e+00> : vector<128x256xf32>
    %24 = tpu.matmul %23, %22, %cst_11 {dimension_numbers = #tpu.dot_dimension_numbers<[1], [0], [0], [1], [0, 0, 1, 1], [], []>} : vector<128x128xf32>, vector<128x256xf32>, vector<128x256xf32> -> vector<128x256xf32>
    %c0_12 = arith.constant 0 : index
    %c0_13 = arith.constant 0 : index
    %25 = vector.load %arg7[%c0_12, %c0_13] : memref<128x1xf32, #tpu.memory_space<vmem>>, vector<128x1xf32>
    %26 = vector.broadcast %25 : vector<128x1xf32> to vector<128x256xf32>
    %27 = arith.addf %24, %26 : vector<128x256xf32>
    %28 = math.tanh %27 : vector<128x256xf32>
    %c0_14 = arith.constant 0 : index
    %c0_15 = arith.constant 0 : index
    %29 = vector.load %arg8[%c0_14, %c0_15] : memref<32x128xf32, #tpu.memory_space<vmem>>, vector<32x128xf32>
    %cst_16 = arith.constant dense<0.000000e+00> : vector<32x256xf32>
    %30 = tpu.matmul %29, %28, %cst_16 {dimension_numbers = #tpu.dot_dimension_numbers<[1], [0], [0], [1], [0, 0, 1, 1], [], []>} : vector<32x128xf32>, vector<128x256xf32>, vector<32x256xf32> -> vector<32x256xf32>
    %c0_17 = arith.constant 0 : index
    %c0_18 = arith.constant 0 : index
    %31 = vector.load %arg9[%c0_17, %c0_18] : memref<32x1xf32, #tpu.memory_space<vmem>>, vector<32x1xf32>
    %32 = vector.broadcast %31 : vector<32x1xf32> to vector<32x256xf32>
    %33 = arith.addf %30, %32 : vector<32x256xf32>
    %c0_19 = arith.constant 0 : index
    %c0_20 = arith.constant 0 : index
    %34 = vector.load %arg10[%c0_19, %c0_20] : memref<32x256xf32, #tpu.memory_space<vmem>>, vector<32x256xf32>
    tpu.vector_store %arg10[%c0_19, %c0_20], %33 {strides = array<i32>} : memref<32x256xf32, #tpu.memory_space<vmem>>, vector<32x256xf32>,
    return
  }
  func.func @transform_0(%arg0: i32) -> (i32, i32) {
    %c0_i32 = arith.constant 0 : i32
    %c0_i32_0 = arith.constant 0 : i32
    return %c0_i32, %arg0 : i32, i32
  }
  func.func @transform_1(%arg0: i32) -> (i32, i32) {
    %c0_i32 = arith.constant 0 : i32
    %c0_i32_0 = arith.constant 0 : i32
    %c0_i32_1 = arith.constant 0 : i32
    return %c0_i32, %c0_i32_0 : i32, i32
  }
  func.func @transform_2(%arg0: i32) -> (i32, i32) {
    %c0_i32 = arith.constant 0 : i32
    %c0_i32_0 = arith.constant 0 : i32
    %c0_i32_1 = arith.constant 0 : i32
    return %c0_i32, %c0_i32_0 : i32, i32
  }
  func.func @transform_3(%arg0: i32) -> (i32, i32) {
    %c0_i32 = arith.constant 0 : i32
    %c0_i32_0 = arith.constant 0 : i32
    %c0_i32_1 = arith.constant 0 : i32
    return %c0_i32, %c0_i32_0 : i32, i32
  }
  func.func @transform_4(%arg0: i32) -> (i32, i32) {
    %c0_i32 = arith.constant 0 : i32
    %c0_i32_0 = arith.constant 0 : i32
    %c0_i32_1 = arith.constant 0 : i32
    return %c0_i32, %c0_i32_0 : i32, i32
  }
  func.func @transform_5(%arg0: i32) -> (i32, i32) {
    %c0_i32 = arith.constant 0 : i32
    %c0_i32_0 = arith.constant 0 : i32
    %c0_i32_1 = arith.constant 0 : i32
    return %c0_i32, %c0_i32_0 : i32, i32
  }
  func.func @transform_6(%arg0: i32) -> (i32, i32) {
    %c0_i32 = arith.constant 0 : i32
    %c0_i32_0 = arith.constant 0 : i32
    %c0_i32_1 = arith.constant 0 : i32
    return %c0_i32, %c0_i32_0 : i32, i32
  }
  func.func @transform_7(%arg0: i32) -> (i32, i32) {
    %c0_i32 = arith.constant 0 : i32
    %c0_i32_0 = arith.constant 0 : i32
    %c0_i32_1 = arith.constant 0 : i32
    return %c0_i32, %c0_i32_0 : i32, i32
  }
  func.func @transform_8(%arg0: i32) -> (i32, i32) {
    %c0_i32 = arith.constant 0 : i32
    %c0_i32_0 = arith.constant 0 : i32
    %c0_i32_1 = arith.constant 0 : i32
    return %c0_i32, %c0_i32_0 : i32, i32
  }
  func.func @transform_9(%arg0: i32) -> (i32, i32) {
    %c0_i32 = arith.constant 0 : i32
    %c0_i32_0 = arith.constant 0 : i32
    return %c0_i32, %arg0 : i32, i32
  }
}

</mosaic_0001>

<llo_original>
// kernel: tpu_custom_call.1
$region0: #{tpu_custom_call.1}
  #allocation0 [shape = 'u32[]', space=smem, size = 0x4, offset = 0x4, fixed_abs, tag = 'smem constant byte address 0x4 - core index']
  #allocation1 [shape = 'u32[144,128]{1,0:T(1,128)}', space=vmem, size = 0x12000, scoped, tag = 'internal scratch']
  %s0 = inlined_call_operand.vmem [shape: f32[2,512], index: 0, kind: input, shape index: {}]
  %s1 = inlined_call_operand.vmem [shape: f32[8,2], index: 1, kind: input, shape index: {}]
  %s2 = inlined_call_operand.vmem [shape: f32[8,1], index: 2, kind: input, shape index: {}]
  %s3 = inlined_call_operand.vmem [shape: f32[128,8], index: 3, kind: input, shape index: {}]
  %s4 = inlined_call_operand.vmem [shape: f32[128,1], index: 4, kind: input, shape index: {}]
  %s5 = inlined_call_operand.vmem [shape: f32[128,128], index: 5, kind: input, shape index: {}]
  %s6 = inlined_call_operand.vmem [shape: f32[128,1], index: 6, kind: input, shape index: {}]
  %s7 = inlined_call_operand.vmem [shape: f32[32,128], index: 7, kind: input, shape index: {}]
  %s8 = inlined_call_operand.vmem [shape: f32[32,1], index: 8, kind: input, shape index: {}]
  %s9 = inlined_call_operand.hbm [shape: f32[32,512], index: 9, kind: output, shape index: {}]
  %s10 = sld [smem:[#allocation0]]
  $region69: #{tpu_custom_call.1} parent=0
    _
  %s12 = ssub.s32 1, %s10
  %s13 = scalar_select 0, %s12, %s10
  $region1: #{tpu_custom_call.1} parent=0
    #allocation2 [shape = 'u8[65536]{0}', space=vmem, size = 0x10000, scoped, tag = 'output window, operand 0']
    #allocation3 [shape = 's32[2]{0}', space=sflag, size = 0x8, scoped, tag = 'scoped memory for tpu_custom_call.1']
    %14 = vsyncpa [#allocation3], 0
    %s15 = scalar_lea.sflag [#allocation3], 1
    %16 = vsyncpa %s15, 0
    loop: start=0, step=1, limit=4
    $region2: #{tpu_custom_call.1} parent=1 // loop_pre_header
      _
    $region3: #{tpu_custom_call.1} parent=1 // loop_header
      %s18 = sphi 0, %s22
      %p19 = scmp.ge.s32.totalorder %s18, 4
      %s28 = sphi 0, %s30
      %s31 = sphi 0, %s28
      %s32 = sphi 0, %s31
      %s48 = sphi 0, %s32
      %s52 = sphi 0, %s52
      %s54 = sphi 0, %s52
      %s55 = sphi 0, %s54
      %s69 = sphi 0, %s55
      %s73 = sphi 0, %s73
      %s75 = sphi 0, %s73
      %s76 = sphi 0, %s75
      %s90 = sphi 0, %s76
      %s94 = sphi 0, %s94
      %s96 = sphi 0, %s94
      %s97 = sphi 0, %s96
      %s111 = sphi 0, %s97
      %s115 = sphi 0, %s115
      %s117 = sphi 0, %s115
      %s118 = sphi 0, %s117
      %s132 = sphi 0, %s118
      %s136 = sphi 0, %s136
      %s138 = sphi 0, %s136
      %s139 = sphi 0, %s138
      %s153 = sphi 0, %s139
      %s157 = sphi 0, %s157
      %s159 = sphi 0, %s157
      %s160 = sphi 0, %s159
      %s174 = sphi 0, %s160
      %s178 = sphi 0, %s178
      %s180 = sphi 0, %s178
      %s181 = sphi 0, %s180
      %s195 = sphi 0, %s181
      %s199 = sphi 0, %s199
      %s201 = sphi 0, %s199
      %s202 = sphi 0, %s201
      %s216 = sphi 0, %s202
      %s222 = sphi 0, %s224
      %s225 = sphi 0, %s222
      %s226 = sphi 0, %s225
      %s242 = sphi 0, %s226
    $region4: #{tpu_custom_call.1} parent=1 // loop_header_branch
      %21 = sbr.rel (%p19) target = $region8
    $region5: #{tpu_custom_call.1} parent=1 // loop_body
      %s23 = ssub.s32 %s18, 1
      %s24 = ssub.s32 %s18, 2
      %s25 = sadd.s32 %s18, 1
      %s26 = ssub.s32 %s18, %s25
      %p27 = scmp.eq.s32.totalorder %s26, 0
      %s29 = sadd.s32 %s28, 1
      %s30 = scalar_select %p27, %s28, %s29
      %p33 = pneg %p27
      %p34 = scmp.eq.s32.totalorder %s18, 1
      %p35 = por %p33, %p34
      %p36 = scmp.ne.s32.totalorder %s28, %s31
      %p37 = scmp.eq.s32.totalorder %s18, 0
      %p38 = por %p36, %p37
      %p39 = scmp.ne.s32.totalorder %s28, %s31
      %p40 = scmp.eq.s32.totalorder %s23, 1
      %p41 = por %p39, %p40
      %p42 = scmp.ne.s32.totalorder %s31, %s32
      %p43 = scmp.eq.s32.totalorder %s23, 0
      %p44 = por %p42, %p43
      %p45 = scmp.ne.s32.totalorder %s31, %s32
      %p46 = scmp.eq.s32.totalorder %s24, 1
      %p47 = por %p45, %p46
      %p49 = scmp.ne.s32.totalorder %s32, %s48
      %p50 = scmp.eq.s32.totalorder %s24, 0
      %p51 = por %p49, %p50
      %s53 = sadd.s32 %s52, 1
      %p56 = scmp.eq.s32.totalorder %s18, 1
      %p57 = scmp.ne.s32.totalorder %s52, %s54
      %p58 = scmp.eq.s32.totalorder %s18, 0
      %p59 = por %p57, %p58
      %p60 = scmp.ne.s32.totalorder %s52, %s54
      %p61 = scmp.eq.s32.totalorder %s23, 1
      %p62 = por %p60, %p61
      %p63 = scmp.ne.s32.totalorder %s54, %s55
      %p64 = scmp.eq.s32.totalorder %s23, 0
      %p65 = por %p63, %p64
      %p66 = scmp.ne.s32.totalorder %s54, %s55
      %p67 = scmp.eq.s32.totalorder %s24, 1
      %p68 = por %p66, %p67
      %p70 = scmp.ne.s32.totalorder %s55, %s69
      %p71 = scmp.eq.s32.totalorder %s24, 0
      %p72 = por %p70, %p71
      %s74 = sadd.s32 %s73, 1
      %p77 = scmp.eq.s32.totalorder %s18, 1
      %p78 = scmp.ne.s32.totalorder %s73, %s75
      %p79 = scmp.eq.s32.totalorder %s18, 0
      %p80 = por %p78, %p79
      %p81 = scmp.ne.s32.totalorder %s73, %s75
      %p82 = scmp.eq.s32.totalorder %s23, 1
      %p83 = por %p81, %p82
      %p84 = scmp.ne.s32.totalorder %s75, %s76
      %p85 = scmp.eq.s32.totalorder %s23, 0
      %p86 = por %p84, %p85
      %p87 = scmp.ne.s32.totalorder %s75, %s76
      %p88 = scmp.eq.s32.totalorder %s24, 1
      %p89 = por %p87, %p88
      %p91 = scmp.ne.s32.totalorder %s76, %s90
      %p92 = scmp.eq.s32.totalorder %s24, 0
      %p93 = por %p91, %p92
      %s95 = sadd.s32 %s94, 1
      %p98 = scmp.eq.s32.totalorder %s18, 1
      %p99 = scmp.ne.s32.totalorder %s94, %s96
      %p100 = scmp.eq.s32.totalorder %s18, 0
      %p101 = por %p99, %p100
      %p102 = scmp.ne.s32.totalorder %s94, %s96
      %p103 = scmp.eq.s32.totalorder %s23, 1
      %p104 = por %p102, %p103
      %p105 = scmp.ne.s32.totalorder %s96, %s97
      %p106 = scmp.eq.s32.totalorder %s23, 0
      %p107 = por %p105, %p106
      %p108 = scmp.ne.s32.totalorder %s96, %s97
      %p109 = scmp.eq.s32.totalorder %s24, 1
      %p110 = por %p108, %p109
      %p112 = scmp.ne.s32.totalorder %s97, %s111
      %p113 = scmp.eq.s32.totalorder %s24, 0
      %p114 = por %p112, %p113
      %s116 = sadd.s32 %s115, 1
      %p119 = scmp.eq.s32.totalorder %s18, 1
      %p120 = scmp.ne.s32.totalorder %s115, %s117
      %p121 = scmp.eq.s32.totalorder %s18, 0
      %p122 = por %p120, %p121
      %p123 = scmp.ne.s32.totalorder %s115, %s117
      %p124 = scmp.eq.s32.totalorder %s23, 1
      %p125 = por %p123, %p124
      %p126 = scmp.ne.s32.totalorder %s117, %s118
      %p127 = scmp.eq.s32.totalorder %s23, 0
      %p128 = por %p126, %p127
      %p129 = scmp.ne.s32.totalorder %s117, %s118
      %p130 = scmp.eq.s32.totalorder %s24, 1
      %p131 = por %p129, %p130
      %p133 = scmp.ne.s32.totalorder %s118, %s132
      %p134 = scmp.eq.s32.totalorder %s24, 0
      %p135 = por %p133, %p134
      %s137 = sadd.s32 %s136, 1
      %p140 = scmp.eq.s32.totalorder %s18, 1
      %p141 = scmp.ne.s32.totalorder %s136, %s138
      %p142 = scmp.eq.s32.totalorder %s18, 0
      %p143 = por %p141, %p142
      %p144 = scmp.ne.s32.totalorder %s136, %s138
      %p145 = scmp.eq.s32.totalorder %s23, 1
      %p146 = por %p144, %p145
      %p147 = scmp.ne.s32.totalorder %s138, %s139
      %p148 = scmp.eq.s32.totalorder %s23, 0
      %p149 = por %p147, %p148
      %p150 = scmp.ne.s32.totalorder %s138, %s139
      %p151 = scmp.eq.s32.totalorder %s24, 1
      %p152 = por %p150, %p151
      %p154 = scmp.ne.s32.totalorder %s139, %s153
      %p155 = scmp.eq.s32.totalorder %s24, 0
      %p156 = por %p154, %p155
      %s158 = sadd.s32 %s157, 1
      %p161 = scmp.eq.s32.totalorder %s18, 1
      %p162 = scmp.ne.s32.totalorder %s157, %s159
      %p163 = scmp.eq.s32.totalorder %s18, 0
      %p164 = por %p162, %p163
      %p165 = scmp.ne.s32.totalorder %s157, %s159
      %p166 = scmp.eq.s32.totalorder %s23, 1
      %p167 = por %p165, %p166
      %p168 = scmp.ne.s32.totalorder %s159, %s160
      %p169 = scmp.eq.s32.totalorder %s23, 0
      %p170 = por %p168, %p169
      %p171 = scmp.ne.s32.totalorder %s159, %s160
      %p172 = scmp.eq.s32.totalorder %s24, 1
      %p173 = por %p171, %p172
      %p175 = scmp.ne.s32.totalorder %s160, %s174
      %p176 = scmp.eq.s32.totalorder %s24, 0
      %p177 = por %p175, %p176
      %s179 = sadd.s32 %s178, 1
      %p182 = scmp.eq.s32.totalorder %s18, 1
      %p183 = scmp.ne.s32.totalorder %s178, %s180
      %p184 = scmp.eq.s32.totalorder %s18, 0
      %p185 = por %p183, %p184
      %p186 = scmp.ne.s32.totalorder %s178, %s180
      %p187 = scmp.eq.s32.totalorder %s23, 1
      %p188 = por %p186, %p187
      %p189 = scmp.ne.s32.totalorder %s180, %s181
      %p190 = scmp.eq.s32.totalorder %s23, 0
      %p191 = por %p189, %p190
      %p192 = scmp.ne.s32.totalorder %s180, %s181
      %p193 = scmp.eq.s32.totalorder %s24, 1
      %p194 = por %p192, %p193
      %p196 = scmp.ne.s32.totalorder %s181, %s195
      %p197 = scmp.eq.s32.totalorder %s24, 0
      %p198 = por %p196, %p197
      %s200 = sadd.s32 %s199, 1
      %p203 = scmp.eq.s32.totalorder %s18, 1
      %p204 = scmp.ne.s32.totalorder %s199, %s201
      %p205 = scmp.eq.s32.totalorder %s18, 0
      %p206 = por %p204, %p205
      %p207 = scmp.ne.s32.totalorder %s199, %s201
      %p208 = scmp.eq.s32.totalorder %s23, 1
      %p209 = por %p207, %p208
      %p210 = scmp.ne.s32.totalorder %s201, %s202
      %p211 = scmp.eq.s32.totalorder %s23, 0
      %p212 = por %p210, %p211
      %p213 = scmp.ne.s32.totalorder %s201, %s202
      %p214 = scmp.eq.s32.totalorder %s24, 1
      %p215 = por %p213, %p214
      %p217 = scmp.ne.s32.totalorder %s202, %s216
      %p218 = scmp.eq.s32.totalorder %s24, 0
      %p219 = por %p217, %p218
      %s220 = ssub.s32 %s18, %s25
      %p221 = scmp.eq.s32.totalorder %s220, 0
      %s223 = sadd.s32 %s222, 1
      %s224 = scalar_select %p221, %s222, %s223
      %p227 = pneg %p221
      %p228 = scmp.eq.s32.totalorder %s18, 1
      %p229 = por %p227, %p228
      %p230 = scmp.ne.s32.totalorder %s222, %s225
      %p231 = scmp.eq.s32.totalorder %s18, 0
      %p232 = por %p230, %p231
      %p233 = scmp.ne.s32.totalorder %s222, %s225
      %p234 = scmp.eq.s32.totalorder %s23, 1
      %p235 = por %p233, %p234
      %p236 = scmp.ne.s32.totalorder %s225, %s226
      %p237 = scmp.eq.s32.totalorder %s23, 0
      %p238 = por %p236, %p237
      %p239 = scmp.ne.s32.totalorder %s225, %s226
      %p240 = scmp.eq.s32.totalorder %s24, 1
      %p241 = por %p239, %p240
      %p243 = scmp.ne.s32.totalorder %s226, %s242
      %p244 = scmp.eq.s32.totalorder %s24, 0
      %p245 = por %p243, %p244
      %p246 = scmp.le.s32.totalorder 1, %s18
      %p247 = scmp.lt.s32.totalorder %s18, 3
      %p248 = pnand %p246, %p247
      %p249 = pneg %p248
      // Predicated region
      $region9: #{tpu_custom_call.1} parent=5 // pred_check
        _
      $region10: #{tpu_custom_call.1} parent=5 // pred_check_branch
        %251 = sbr.rel (%p248) target = $region12
      $region11: #{tpu_custom_call.1} parent=5 // pred_region
        %s252 = ssub.s32 %s18, 1
        // Predicated region
        $region13: #{tpu_custom_call.1} parent=11 // pred_check
          %p253 = pneg %p65
        $region14: #{tpu_custom_call.1} parent=11 // pred_check_branch
          %255 = sbr.rel (%p253) target = $region16
        $region15: #{tpu_custom_call.1} parent=11 // pred_region
          _
        $region16: #{tpu_custom_call.1} parent=11 // pred_fallthru
          _
        // Predicated region
        $region17: #{tpu_custom_call.1} parent=11 // pred_check
          %p256 = pneg %p86
        $region18: #{tpu_custom_call.1} parent=11 // pred_check_branch
          %258 = sbr.rel (%p256) target = $region20
        $region19: #{tpu_custom_call.1} parent=11 // pred_region
          _
        $region20: #{tpu_custom_call.1} parent=11 // pred_fallthru
          _
        // Predicated region
        $region21: #{tpu_custom_call.1} parent=11 // pred_check
          %p259 = pneg %p107
        $region22: #{tpu_custom_call.1} parent=11 // pred_check_branch
          %261 = sbr.rel (%p259) target = $region24
        $region23: #{tpu_custom_call.1} parent=11 // pred_region
          _
        $region24: #{tpu_custom_call.1} parent=11 // pred_fallthru
          _
        // Predicated region
        $region25: #{tpu_custom_call.1} parent=11 // pred_check
          %p262 = pneg %p128
        $region26: #{tpu_custom_call.1} parent=11 // pred_check_branch
          %264 = sbr.rel (%p262) target = $region28
        $region27: #{tpu_custom_call.1} parent=11 // pred_region
          _
        $region28: #{tpu_custom_call.1} parent=11 // pred_fallthru
          _
        // Predicated region
        $region29: #{tpu_custom_call.1} parent=11 // pred_check
          %p265 = pneg %p149
        $region30: #{tpu_custom_call.1} parent=11 // pred_check_branch
          %267 = sbr.rel (%p265) target = $region32
        $region31: #{tpu_custom_call.1} parent=11 // pred_region
          _
        $region32: #{tpu_custom_call.1} parent=11 // pred_fallthru
          _
        // Predicated region
        $region33: #{tpu_custom_call.1} parent=11 // pred_check
          %p268 = pneg %p170
        $region34: #{tpu_custom_call.1} parent=11 // pred_check_branch
          %270 = sbr.rel (%p268) target = $region36
        $region35: #{tpu_custom_call.1} parent=11 // pred_region
          _
        $region36: #{tpu_custom_call.1} parent=11 // pred_fallthru
          _
        // Predicated region
        $region37: #{tpu_custom_call.1} parent=11 // pred_check
          %p271 = pneg %p191
        $region38: #{tpu_custom_call.1} parent=11 // pred_check_branch
          %273 = sbr.rel (%p271) target = $region40
        $region39: #{tpu_custom_call.1} parent=11 // pred_region
          _
        $region40: #{tpu_custom_call.1} parent=11 // pred_fallthru
          _
        // Predicated region
        $region41: #{tpu_custom_call.1} parent=11 // pred_check
          %p274 = pneg %p212
        $region42: #{tpu_custom_call.1} parent=11 // pred_check_branch
          %276 = sbr.rel (%p274) target = $region44
        $region43: #{tpu_custom_call.1} parent=11 // pred_region
          _
        $region44: #{tpu_custom_call.1} parent=11 // pred_fallthru
          _
      $region12: #{tpu_custom_call.1} parent=5 // pred_fallthru
        _
      %p277 = scmp.lt.s32.totalorder %s18, 2
      // Predicated region
      $region45: #{tpu_custom_call.1} parent=5 // pred_check
        %p278 = pneg %p277
      $region46: #{tpu_custom_call.1} parent=5 // pred_check_branch
        %280 = sbr.rel (%p278) target = $region48
      $region47: #{tpu_custom_call.1} parent=5 // pred_region
        // Predicated region
        $region49: #{tpu_custom_call.1} parent=47 // pred_check
          %p281 = pneg %p38
        $region50: #{tpu_custom_call.1} parent=47 // pred_check_branch
          %283 = sbr.rel (%p281) target = $region52
        $region51: #{tpu_custom_call.1} parent=47 // pred_region
          %s284 = smul.u32 2, %s18
          %p285 = scmp.lt.s32.totalorder %s284, 3
          %s286 = scalar_select %p285, %s284, 3
          %s287 = smul.addr %s286, 2
          %s288 = scalar_lea.vmem %s0, %s287
          %s289 = smul.u32 2, %s18
        $region52: #{tpu_custom_call.1} parent=47 // pred_fallthru
          _
      $region48: #{tpu_custom_call.1} parent=5 // pred_fallthru
        _
      %p290 = scmp.le.s32.totalorder 1, %s18
      %p291 = scmp.lt.s32.totalorder %s18, 3
      %p292 = pnand %p290, %p291
      %p293 = pneg %p292
      // Predicated region
      $region53: #{tpu_custom_call.1} parent=5 // pred_check
        _
      $region54: #{tpu_custom_call.1} parent=5 // pred_check_branch
        %295 = sbr.rel (%p292) target = $region56
      $region55: #{tpu_custom_call.1} parent=5 // pred_region
        %s296 = ssub.s32 %s18, 1
        %s297 = smul.u32 2, %s23
        %p298 = scmp.lt.s32.totalorder %s297, 3
        %s299 = scalar_select %p298, %s297, 3
        %s300 = smul.addr %s299, 2
        %s301 = scalar_lea.vmem %s0, %s300
        %p302 = pneg %p44
        %p303 = pneg %p41
        %p304 = pneg %p65
        %p305 = pneg %p62
        %p306 = pneg %p86
        %p307 = pneg %p83
        %p308 = pneg %p107
        %p309 = pneg %p104
        %p310 = pneg %p128
        %p311 = pneg %p125
        %p312 = pneg %p149
        %p313 = pneg %p146
        %p314 = pneg %p170
        %p315 = pneg %p167
        %p316 = pneg %p191
        %p317 = pneg %p188
        %p318 = pneg %p212
        %p319 = pneg %p209
        %p320 = pneg %p238
        %p321 = pneg %p235
        %s322 = sand.u32 %s225, 1
        %s323 = scalar_lea.sflag [#allocation3], %s322
        %s324 = sand.u32 %s225, 1
        %s325 = smul.addr %s324, 64
        %s326 = scalar_lea.vmem [#allocation2], %s325
        %s327 = smul.u32 2, %s23
        %p328 = scmp.lt.s32.totalorder %s327, 3
        %s329 = scalar_select %p328, %s327, 3
        %s330 = smul.addr %s329, 2
        %s331 = scalar_lea.vmem %s0, %s330
        %s332 = smul.u32 2, %s23
        %s333 = smul.u32 2, %s23
        %v334 = vld [vmem:[%s331] sm:$0xf]
        %v335 = vld [vmem:[%s1] sm:$0xff]
        %337 = vset.pattern.permute.xlu0 0
        %338 = vperm.xlu0 %337, %v335
        %v339 = vpop.permute.xlu0 %338
        %v342 = vlaneseq
        %v343 = vshrl.u32 %v342, 7
        %v344 = vsub.s32 0, %v343
        %v345 = vrot.slane %v334, %v344
        %v346 = vlaneseq
        %v347 = vshrl.u32 %v346, 7
        %v348 = vsub.s32 2, %v347
        %v349 = vrot.slane %v334, %v348
        %v352 = vlaneseq
        %v353 = vshrl.u32 %v352, 7
        %v354 = vsub.s32 0, %v353
        %v355 = vrot.slane %v345, %v354
        %v356 = vlaneseq
        %v357 = vshrl.u32 %v356, 7
        %v358 = vsub.s32 0, %v357
        %v359 = vrot.slane %v349, %v358
        %v360 = vmul.f32 %v339, %v355
        %v361 = vmul.f32 %v339, %v359
        %362 = vset.pattern.permute.xlu0 1
        %363 = vperm.xlu0 %362, %v335
        %v364 = vpop.permute.xlu0 %363
        %v366 = vlaneseq
        %v367 = vshrl.u32 %v366, 7
        %v368 = vsub.s32 1, %v367
        %v369 = vrot.slane %v334, %v368
        %v370 = vlaneseq
        %v371 = vshrl.u32 %v370, 7
        %v372 = vsub.s32 3, %v371
        %v373 = vrot.slane %v334, %v372
        %v376 = vlaneseq
        %v377 = vshrl.u32 %v376, 7
        %v378 = vsub.s32 1, %v377
        %v379 = vrot.slane %v369, %v378
        %v380 = vlaneseq
        %v381 = vshrl.u32 %v380, 7
        %v382 = vsub.s32 1, %v381
        %v383 = vrot.slane %v373, %v382
        %v384 = vmul.f32 %v364, %v379
        %v385 = vmul.f32 %v364, %v383
        %v386 = vadd.f32 %v360, %v384
        %v387 = vadd.f32 %v361, %v385
        %v388 = vld [vmem:[%s2] sm:$0xff]
        %390 = vset.pattern.permute.xlu0 0
        %391 = vperm.xlu0 %390, %v388
        %v392 = vpop.permute.xlu0 %391
        %v394 = vadd.f32 %v386, %v392
        %v395 = vadd.f32 %v387, %v392
        %v396 = vtanh.pop %v394
        %v397 = vtanh.pop %v395
        %v398 = vld [vmem:[%s3] sm:$0xff]
        %v399 = vld [vmem:[%s3 + $0x8] sm:$0xff]
        %v400 = vld [vmem:[%s3 + $0x10] sm:$0xff]
        %v401 = vld [vmem:[%s3 + $0x18] sm:$0xff]
        %v402 = vld [vmem:[%s3 + $0x20] sm:$0xff]
        %v403 = vld [vmem:[%s3 + $0x28] sm:$0xff]
        %v404 = vld [vmem:[%s3 + $0x30] sm:$0xff]
        %v405 = vld [vmem:[%s3 + $0x38] sm:$0xff]
        %v406 = vld [vmem:[%s3 + $0x40] sm:$0xff]
        %v407 = vld [vmem:[%s3 + $0x48] sm:$0xff]
        %v408 = vld [vmem:[%s3 + $0x50] sm:$0xff]
        %v409 = vld [vmem:[%s3 + $0x58] sm:$0xff]
        %v410 = vld [vmem:[%s3 + $0x60] sm:$0xff]
        %v411 = vld [vmem:[%s3 + $0x68] sm:$0xff]
        %v412 = vld [vmem:[%s3 + $0x70] sm:$0xff]
        %v413 = vld [vmem:[%s3 + $0x78] sm:$0xff]
        %v414 = vld [vmem:[%s4] sm:$0xff]
        %v415 = vld [vmem:[%s4 + $0x8] sm:$0xff]
        %v416 = vld [vmem:[%s4 + $0x10] sm:$0xff]
        %v417 = vld [vmem:[%s4 + $0x18] sm:$0xff]
        %v418 = vld [vmem:[%s4 + $0x20] sm:$0xff]
        %v419 = vld [vmem:[%s4 + $0x28] sm:$0xff]
        %v420 = vld [vmem:[%s4 + $0x30] sm:$0xff]
        %v421 = vld [vmem:[%s4 + $0x38] sm:$0xff]
        %v422 = vld [vmem:[%s4 + $0x40] sm:$0xff]
        %v423 = vld [vmem:[%s4 + $0x48] sm:$0xff]
        %v424 = vld [vmem:[%s4 + $0x50] sm:$0xff]
        %v425 = vld [vmem:[%s4 + $0x58] sm:$0xff]
        %v426 = vld [vmem:[%s4 + $0x60] sm:$0xff]
        %v427 = vld [vmem:[%s4 + $0x68] sm:$0xff]
        %v428 = vld [vmem:[%s4 + $0x70] sm:$0xff]
        %v429 = vld [vmem:[%s4 + $0x78] sm:$0xff]
        %431 = vset.pattern.permute.xlu0 0
        %432 = vperm.xlu0 %431, %v414
        %v433 = vpop.permute.xlu0 %432
        %436 = vset.pattern.permute.xlu0 0
        %437 = vperm.xlu0 %436, %v415
        %v438 = vpop.permute.xlu0 %437
        %441 = vset.pattern.permute.xlu0 0
        %442 = vperm.xlu0 %441, %v416
        %v443 = vpop.permute.xlu0 %442
        %446 = vset.pattern.permute.xlu0 0
        %447 = vperm.xlu0 %446, %v417
        %v448 = vpop.permute.xlu0 %447
        %451 = vset.pattern.permute.xlu0 0
        %452 = vperm.xlu0 %451, %v418
        %v453 = vpop.permute.xlu0 %452
        %456 = vset.pattern.permute.xlu0 0
        %457 = vperm.xlu0 %456, %v419
        %v458 = vpop.permute.xlu0 %457
        %461 = vset.pattern.permute.xlu0 0
        %462 = vperm.xlu0 %461, %v420
        %v463 = vpop.permute.xlu0 %462
        %466 = vset.pattern.permute.xlu0 0
        %467 = vperm.xlu0 %466, %v421
        %v468 = vpop.permute.xlu0 %467
        %471 = vset.pattern.permute.xlu0 0
        %472 = vperm.xlu0 %471, %v422
        %v473 = vpop.permute.xlu0 %472
        %476 = vset.pattern.permute.xlu0 0
        %477 = vperm.xlu0 %476, %v423
        %v478 = vpop.permute.xlu0 %477
        %481 = vset.pattern.permute.xlu0 0
        %482 = vperm.xlu0 %481, %v424
        %v483 = vpop.permute.xlu0 %482
        %486 = vset.pattern.permute.xlu0 0
        %487 = vperm.xlu0 %486, %v425
        %v488 = vpop.permute.xlu0 %487
        %491 = vset.pattern.permute.xlu0 0
        %492 = vperm.xlu0 %491, %v426
        %v493 = vpop.permute.xlu0 %492
        %496 = vset.pattern.permute.xlu0 0
        %497 = vperm.xlu0 %496, %v427
        %v498 = vpop.permute.xlu0 %497
        %501 = vset.pattern.permute.xlu0 0
        %502 = vperm.xlu0 %501, %v428
        %v503 = vpop.permute.xlu0 %502
        %506 = vset.pattern.permute.xlu0 0
        %507 = vperm.xlu0 %506, %v429
        %v508 = vpop.permute.xlu0 %507
        %vm510 = vcmask 64512
        %v512 = vsel %vm510, %v398, 0
        %v515 = vsel %vm510, %v399, 0
        %v518 = vsel %vm510, %v400, 0
        %v521 = vsel %vm510, %v401, 0
        %v524 = vsel %vm510, %v402, 0
        %v527 = vsel %vm510, %v403, 0
        %v530 = vsel %vm510, %v404, 0
        %v533 = vsel %vm510, %v405, 0
        %v536 = vsel %vm510, %v406, 0
        %v539 = vsel %vm510, %v407, 0
        %v542 = vsel %vm510, %v408, 0
        %v545 = vsel %vm510, %v409, 0
        %v548 = vsel %vm510, %v410, 0
        %v551 = vsel %vm510, %v411, 0
        %v554 = vsel %vm510, %v412, 0
        %v557 = vsel %vm510, %v413, 0
        %559 = vmatprep.subr.mxu0 %v397
        %560 = vmatpush1.msra.mxu0 %v396
        %561 = vmatprep.subr.mxu0 0.0
        %562 = vmatpush1.msra.mxu0 0.0
        %563 = vmatprep.subr.mxu0 0.0
        %564 = vmatpush1.msra.mxu0 0.0
        %565 = vmatprep.subr.mxu0 0.0
        %566 = vmatpush1.msra.mxu0 0.0
        %567 = vmatprep.subr.mxu0 0.0
        %568 = vmatpush1.msra.mxu0 0.0
        %569 = vmatprep.subr.mxu0 0.0
        %570 = vmatpush1.msra.mxu0 0.0
        %571 = vmatprep.subr.mxu0 0.0
        %572 = vmatpush1.msra.mxu0 0.0
        %573 = vmatprep.subr.mxu0 0.0
        %574 = vmatpush1.msra.mxu0 0.0
        %575 = vmatprep.subr.mxu0 0.0
        %576 = vmatpush1.msra.mxu0 0.0
        %577 = vmatprep.subr.mxu0 0.0
        %578 = vmatpush1.msra.mxu0 0.0
        %579 = vmatprep.subr.mxu0 0.0
        %580 = vmatpush1.msra.mxu0 0.0
        %581 = vmatprep.subr.mxu0 0.0
        %582 = vmatpush1.msra.mxu0 0.0
        %583 = vmatprep.subr.mxu0 0.0
        %584 = vmatpush1.msra.mxu0 0.0
        %585 = vmatprep.subr.mxu0 0.0
        %586 = vmatpush1.msra.mxu0 0.0
        %587 = vmatprep.subr.mxu0 0.0
        %588 = vmatpush1.msra.mxu0 0.0
        %589 = vmatprep.subr.mxu0 0.0
        %590 = vmatpush1.msra.mxu0 0.0
        %591 = vmatprep.subr.mxu0 0.0
        %592 = vmatpush1.msra.mxu0 0.0
        %593 = vmatprep.subr.mxu0 0.0
        %594 = vmatpush1.msra.mxu0 0.0
        %595 = vmatprep.subr.mxu0 0.0
        %596 = vmatpush1.msra.mxu0 0.0
        %597 = vmatprep.subr.mxu0 0.0
        %598 = vmatpush1.msra.mxu0 0.0
        %599 = vmatprep.subr.mxu0 0.0
        %600 = vmatpush1.msra.mxu0 0.0
        %601 = vmatprep.subr.mxu0 0.0
        %602 = vmatpush1.msra.mxu0 0.0
        %603 = vmatprep.subr.mxu0 0.0
        %604 = vmatpush1.msra.mxu0 0.0
        %605 = vmatprep.subr.mxu0 0.0
        %606 = vmatpush1.msra.mxu0 0.0
        %607 = vmatprep.subr.mxu0 0.0
        %608 = vmatpush1.msra.mxu0 0.0
        %609 = vmatprep.subr.mxu0 0.0
        %610 = vmatpush1.msra.mxu0 0.0
        %611 = vmatprep.subr.mxu0 0.0
        %612 = vmatpush1.msra.mxu0 0.0
        %613 = vmatprep.subr.mxu0 0.0
        %614 = vmatpush1.msra.mxu0 0.0
        %615 = vmatprep.subr.mxu0 0.0
        %616 = vmatpush1.msra.mxu0 0.0
        %617 = vmatprep.subr.mxu0 0.0
        %618 = vmatpush1.msra.mxu0 0.0
        %619 = vmatprep.subr.mxu0 0.0
        %620 = vmatpush1.msra.mxu0 0.0
        %621 = vmatprep.subr.mxu0 0.0
        %622 = vmatpush1.msra.mxu0 0.0
        %623 = vmatprep.mubr.f32.mxu0 0.0
        %624 = vmatmul.mubr.f32.gmra.mrb[0].mxu0 %v512
        %v625 = vpop.f32.mrb[0].mxu0
        %v626 = vadd.f32 %v433, %v625
        %v627 = vpop.f32.mrb[0].mxu0
        %v628 = vadd.f32 %v433, %v627
        %629 = vmatprep.mubr.f32.mxu0 0.0
        %630 = vmatmul.mubr.f32.gmra.mrb[0].mxu0 %v515
        %v631 = vpop.f32.mrb[0].mxu0
        %v632 = vadd.f32 %v438, %v631
        %v633 = vpop.f32.mrb[0].mxu0
        %v634 = vadd.f32 %v438, %v633
        %635 = vmatprep.mubr.f32.mxu0 0.0
        %636 = vmatmul.mubr.f32.gmra.mrb[0].mxu0 %v518
        %v637 = vpop.f32.mrb[0].mxu0
        %v638 = vadd.f32 %v443, %v637
        %v639 = vpop.f32.mrb[0].mxu0
        %v640 = vadd.f32 %v443, %v639
        %641 = vmatprep.mubr.f32.mxu0 0.0
        %642 = vmatmul.mubr.f32.gmra.mrb[0].mxu0 %v521
        %v643 = vpop.f32.mrb[0].mxu0
        %v644 = vadd.f32 %v448, %v643
        %v645 = vpop.f32.mrb[0].mxu0
        %v646 = vadd.f32 %v448, %v645
        %647 = vmatprep.mubr.f32.mxu0 0.0
        %648 = vmatmul.mubr.f32.gmra.mrb[0].mxu0 %v524
        %v649 = vpop.f32.mrb[0].mxu0
        %v650 = vadd.f32 %v453, %v649
        %v651 = vpop.f32.mrb[0].mxu0
        %v652 = vadd.f32 %v453, %v651
        %653 = vmatprep.mubr.f32.mxu0 0.0
        %654 = vmatmul.mubr.f32.gmra.mrb[0].mxu0 %v527
        %v655 = vpop.f32.mrb[0].mxu0
        %v656 = vadd.f32 %v458, %v655
        %v657 = vpop.f32.mrb[0].mxu0
        %v658 = vadd.f32 %v458, %v657
        %659 = vmatprep.mubr.f32.mxu0 0.0
        %660 = vmatmul.mubr.f32.gmra.mrb[0].mxu0 %v530
        %v661 = vpop.f32.mrb[0].mxu0
        %v662 = vadd.f32 %v463, %v661
        %v663 = vpop.f32.mrb[0].mxu0
        %v664 = vadd.f32 %v463, %v663
        %665 = vmatprep.mubr.f32.mxu0 0.0
        %666 = vmatmul.mubr.f32.gmra.mrb[0].mxu0 %v533
        %v667 = vpop.f32.mrb[0].mxu0
        %v668 = vadd.f32 %v468, %v667
        %v669 = vpop.f32.mrb[0].mxu0
        %v670 = vadd.f32 %v468, %v669
        %671 = vmatprep.mubr.f32.mxu0 0.0
        %672 = vmatmul.mubr.f32.gmra.mrb[0].mxu0 %v536
        %v673 = vpop.f32.mrb[0].mxu0
        %v674 = vadd.f32 %v473, %v673
        %v675 = vpop.f32.mrb[0].mxu0
        %v676 = vadd.f32 %v473, %v675
        %677 = vmatprep.mubr.f32.mxu0 0.0
        %678 = vmatmul.mubr.f32.gmra.mrb[0].mxu0 %v539
        %v679 = vpop.f32.mrb[0].mxu0
        %v680 = vadd.f32 %v478, %v679
        %v681 = vpop.f32.mrb[0].mxu0
        %v682 = vadd.f32 %v478, %v681
        %683 = vmatprep.mubr.f32.mxu0 0.0
        %684 = vmatmul.mubr.f32.gmra.mrb[0].mxu0 %v542
        %v685 = vpop.f32.mrb[0].mxu0
        %v686 = vadd.f32 %v483, %v685
        %v687 = vpop.f32.mrb[0].mxu0
        %v688 = vadd.f32 %v483, %v687
        %689 = vmatprep.mubr.f32.mxu0 0.0
        %690 = vmatmul.mubr.f32.gmra.mrb[0].mxu0 %v545
        %v691 = vpop.f32.mrb[0].mxu0
        %v692 = vadd.f32 %v488, %v691
        %v693 = vpop.f32.mrb[0].mxu0
        %v694 = vadd.f32 %v488, %v693
        %695 = vmatprep.mubr.f32.mxu0 0.0
        %696 = vmatmul.mubr.f32.gmra.mrb[0].mxu0 %v548
        %v697 = vpop.f32.mrb[0].mxu0
        %v698 = vadd.f32 %v493, %v697
        %v699 = vpop.f32.mrb[0].mxu0
        %v700 = vadd.f32 %v493, %v699
        %701 = vmatprep.mubr.f32.mxu0 0.0
        %702 = vmatmul.mubr.f32.gmra.mrb[0].mxu0 %v551
        %v703 = vpop.f32.mrb[0].mxu0
        %v704 = vadd.f32 %v498, %v703
        %v705 = vpop.f32.mrb[0].mxu0
        %v706 = vadd.f32 %v498, %v705
        %707 = vmatprep.mubr.f32.mxu0 0.0
        %708 = vmatmul.mubr.f32.gmra.mrb[0].mxu0 %v554
        %v709 = vpop.f32.mrb[0].mxu0
        %v710 = vadd.f32 %v503, %v709
        %v711 = vpop.f32.mrb[0].mxu0
        %v712 = vadd.f32 %v503, %v711
        %713 = vmatprep.mubr.f32.mxu0 0.0
        %714 = vmatmul.mubr.f32.gmra.mrb[0].mxu0 %v557
        %v715 = vpop.f32.mrb[0].mxu0
        %v716 = vadd.f32 %v508, %v715
        %v717 = vpop.f32.mrb[0].mxu0
        %v718 = vadd.f32 %v508, %v717
        %719 = vdwg.mxu0
        %v720 = vtanh.pop %v626
        %v721 = vtanh.pop %v628
        %v722 = vtanh.pop %v632
        %v723 = vtanh.pop %v634
        %v724 = vtanh.pop %v638
        %v725 = vtanh.pop %v640
        %v726 = vtanh.pop %v644
        %v727 = vtanh.pop %v646
        %v728 = vtanh.pop %v650
        %v729 = vtanh.pop %v652
        %v730 = vtanh.pop %v656
        %v731 = vtanh.pop %v658
        %v732 = vtanh.pop %v662
        %v733 = vtanh.pop %v664
        %v734 = vtanh.pop %v668
        %v735 = vtanh.pop %v670
        %v736 = vtanh.pop %v674
        %v737 = vtanh.pop %v676
        %v738 = vtanh.pop %v680
        %v739 = vtanh.pop %v682
        %v740 = vtanh.pop %v686
        %v741 = vtanh.pop %v688
        %v742 = vtanh.pop %v692
        %v743 = vtanh.pop %v694
        %v744 = vtanh.pop %v698
        %v745 = vtanh.pop %v700
        %v746 = vtanh.pop %v704
        %v747 = vtanh.pop %v706
        %v748 = vtanh.pop %v710
        %v749 = vtanh.pop %v712
        %v750 = vtanh.pop %v716
        %v751 = vtanh.pop %v718
        %v752 = vld [vmem:[%s5] sm:$0xff]
        %v753 = vld [vmem:[%s5 + $0x8] sm:$0xff]
        %v754 = vld [vmem:[%s5 + $0x10] sm:$0xff]
        %v755 = vld [vmem:[%s5 + $0x18] sm:$0xff]
        %v756 = vld [vmem:[%s5 + $0x20] sm:$0xff]
        %v757 = vld [vmem:[%s5 + $0x28] sm:$0xff]
        %v758 = vld [vmem:[%s5 + $0x30] sm:$0xff]
        %v759 = vld [vmem:[%s5 + $0x38] sm:$0xff]
        %v760 = vld [vmem:[%s5 + $0x40] sm:$0xff]
        %v761 = vld [vmem:[%s5 + $0x48] sm:$0xff]
        %v762 = vld [vmem:[%s5 + $0x50] sm:$0xff]
        %v763 = vld [vmem:[%s5 + $0x58] sm:$0xff]
        %v764 = vld [vmem:[%s5 + $0x60] sm:$0xff]
        %v765 = vld [vmem:[%s5 + $0x68] sm:$0xff]
        %v766 = vld [vmem:[%s5 + $0x70] sm:$0xff]
        %v767 = vld [vmem:[%s5 + $0x78] sm:$0xff]
        %v768 = vld [vmem:[%s6] sm:$0xff]
        %v769 = vld [vmem:[%s6 + $0x8] sm:$0xff]
        %v770 = vld [vmem:[%s6 + $0x10] sm:$0xff]
        %v771 = vld [vmem:[%s6 + $0x18] sm:$0xff]
        %v772 = vld [vmem:[%s6 + $0x20] sm:$0xff]
        %v773 = vld [vmem:[%s6 + $0x28] sm:$0xff]
        %v774 = vld [vmem:[%s6 + $0x30] sm:$0xff]
        %v775 = vld [vmem:[%s6 + $0x38] sm:$0xff]
        %v776 = vld [vmem:[%s6 + $0x40] sm:$0xff]
        %v777 = vld [vmem:[%s6 + $0x48] sm:$0xff]
        %v778 = vld [vmem:[%s6 + $0x50] sm:$0xff]
        %v779 = vld [vmem:[%s6 + $0x58] sm:$0xff]
        %v780 = vld [vmem:[%s6 + $0x60] sm:$0xff]
        %v781 = vld [vmem:[%s6 + $0x68] sm:$0xff]
        %v782 = vld [vmem:[%s6 + $0x70] sm:$0xff]
        %v783 = vld [vmem:[%s6 + $0x78] sm:$0xff]
        %785 = vset.pattern.permute.xlu0 0
        %786 = vperm.xlu0 %785, %v768
        %v787 = vpop.permute.xlu0 %786
        %790 = vset.pattern.permute.xlu0 0
        %791 = vperm.xlu0 %790, %v769
        %v792 = vpop.permute.xlu0 %791
        %795 = vset.pattern.permute.xlu0 0
        %796 = vperm.xlu0 %795, %v770
        %v797 = vpop.permute.xlu0 %796
        %800 = vset.pattern.permute.xlu0 0
        %801 = vperm.xlu0 %800, %v771
        %v802 = vpop.permute.xlu0 %801
        %805 = vset.pattern.permute.xlu0 0
        %806 = vperm.xlu0 %805, %v772
        %v807 = vpop.permute.xlu0 %806
        %810 = vset.pattern.permute.xlu0 0
        %811 = vperm.xlu0 %810, %v773
        %v812 = vpop.permute.xlu0 %811
        %815 = vset.pattern.permute.xlu0 0
        %816 = vperm.xlu0 %815, %v774
        %v817 = vpop.permute.xlu0 %816
        %820 = vset.pattern.permute.xlu0 0
        %821 = vperm.xlu0 %820, %v775
        %v822 = vpop.permute.xlu0 %821
        %825 = vset.pattern.permute.xlu0 0
        %826 = vperm.xlu0 %825, %v776
        %v827 = vpop.permute.xlu0 %826
        %830 = vset.pattern.permute.xlu0 0
        %831 = vperm.xlu0 %830, %v777
        %v832 = vpop.permute.xlu0 %831
        %835 = vset.pattern.permute.xlu0 0
        %836 = vperm.xlu0 %835, %v778
        %v837 = vpop.permute.xlu0 %836
        %840 = vset.pattern.permute.xlu0 0
        %841 = vperm.xlu0 %840, %v779
        %v842 = vpop.permute.xlu0 %841
        %845 = vset.pattern.permute.xlu0 0
        %846 = vperm.xlu0 %845, %v780
        %v847 = vpop.permute.xlu0 %846
        %850 = vset.pattern.permute.xlu0 0
        %851 = vperm.xlu0 %850, %v781
        %v852 = vpop.permute.xlu0 %851
        %855 = vset.pattern.permute.xlu0 0
        %856 = vperm.xlu0 %855, %v782
        %v857 = vpop.permute.xlu0 %856
        %860 = vset.pattern.permute.xlu0 0
        %861 = vperm.xlu0 %860, %v783
        %v862 = vpop.permute.xlu0 %861
        %864 = vmatprep.subr.mxu0 %v721
        %865 = vmatpush1.msra.mxu0 %v720
        %866 = vmatprep.subr.mxu0 %v723
        %867 = vmatpush1.msra.mxu0 %v722
        %868 = vmatprep.subr.mxu0 %v725
        %869 = vmatpush1.msra.mxu0 %v724
        %870 = vmatprep.subr.mxu0 %v727
        %871 = vmatpush1.msra.mxu0 %v726
        %872 = vmatprep.subr.mxu0 %v729
        %873 = vmatpush1.msra.mxu0 %v728
        %874 = vmatprep.subr.mxu0 %v731
        %875 = vmatpush1.msra.mxu0 %v730
        %876 = vmatprep.subr.mxu0 %v733
        %877 = vmatpush1.msra.mxu0 %v732
        %878 = vmatprep.subr.mxu0 %v735
        %879 = vmatpush1.msra.mxu0 %v734
        %880 = vmatprep.subr.mxu0 %v737
        %881 = vmatpush1.msra.mxu0 %v736
        %882 = vmatprep.subr.mxu0 %v739
        %883 = vmatpush1.msra.mxu0 %v738
        %884 = vmatprep.subr.mxu0 %v741
        %885 = vmatpush1.msra.mxu0 %v740
        %886 = vmatprep.subr.mxu0 %v743
        %887 = vmatpush1.msra.mxu0 %v742
        %888 = vmatprep.subr.mxu0 %v745
        %889 = vmatpush1.msra.mxu0 %v744
        %890 = vmatprep.subr.mxu0 %v747
        %891 = vmatpush1.msra.mxu0 %v746
        %892 = vmatprep.subr.mxu0 %v749
        %893 = vmatpush1.msra.mxu0 %v748
        %894 = vmatprep.subr.mxu0 %v751
        %895 = vmatpush1.msra.mxu0 %v750
        %896 = vmatprep.subr.mxu0 0.0
        %897 = vmatpush1.msra.mxu0 0.0
        %898 = vmatprep.subr.mxu0 0.0
        %899 = vmatpush1.msra.mxu0 0.0
        %900 = vmatprep.subr.mxu0 0.0
        %901 = vmatpush1.msra.mxu0 0.0
        %902 = vmatprep.subr.mxu0 0.0
        %903 = vmatpush1.msra.mxu0 0.0
        %904 = vmatprep.subr.mxu0 0.0
        %905 = vmatpush1.msra.mxu0 0.0
        %906 = vmatprep.subr.mxu0 0.0
        %907 = vmatpush1.msra.mxu0 0.0
        %908 = vmatprep.subr.mxu0 0.0
        %909 = vmatpush1.msra.mxu0 0.0
        %910 = vmatprep.subr.mxu0 0.0
        %911 = vmatpush1.msra.mxu0 0.0
        %912 = vmatprep.subr.mxu0 0.0
        %913 = vmatpush1.msra.mxu0 0.0
        %914 = vmatprep.subr.mxu0 0.0
        %915 = vmatpush1.msra.mxu0 0.0
        %916 = vmatprep.subr.mxu0 0.0
        %917 = vmatpush1.msra.mxu0 0.0
        %918 = vmatprep.subr.mxu0 0.0
        %919 = vmatpush1.msra.mxu0 0.0
        %920 = vmatprep.subr.mxu0 0.0
        %921 = vmatpush1.msra.mxu0 0.0
        %922 = vmatprep.subr.mxu0 0.0
        %923 = vmatpush1.msra.mxu0 0.0
        %924 = vmatprep.subr.mxu0 0.0
        %925 = vmatpush1.msra.mxu0 0.0
        %926 = vmatprep.subr.mxu0 0.0
        %927 = vmatpush1.msra.mxu0 0.0
        %928 = vmatprep.mubr.f32.mxu0 0.0
        %929 = vmatmul.mubr.f32.gmra.mrb[0].mxu0 %v752
        %v930 = vpop.f32.mrb[0].mxu0
        %v931 = vadd.f32 %v787, %v930
        %v932 = vpop.f32.mrb[0].mxu0
        %v933 = vadd.f32 %v787, %v932
        %934 = vmatprep.mubr.f32.mxu0 0.0
        %935 = vmatmul.mubr.f32.gmra.mrb[0].mxu0 %v753
        %v936 = vpop.f32.mrb[0].mxu0
        %v937 = vadd.f32 %v792, %v936
        %v938 = vpop.f32.mrb[0].mxu0
        %v939 = vadd.f32 %v792, %v938
        %940 = vmatprep.mubr.f32.mxu0 0.0
        %941 = vmatmul.mubr.f32.gmra.mrb[0].mxu0 %v754
        %v942 = vpop.f32.mrb[0].mxu0
        %v943 = vadd.f32 %v797, %v942
        %v944 = vpop.f32.mrb[0].mxu0
        %v945 = vadd.f32 %v797, %v944
        %946 = vmatprep.mubr.f32.mxu0 0.0
        %947 = vmatmul.mubr.f32.gmra.mrb[0].mxu0 %v755
        %v948 = vpop.f32.mrb[0].mxu0
        %v949 = vadd.f32 %v802, %v948
        %v950 = vpop.f32.mrb[0].mxu0
        %v951 = vadd.f32 %v802, %v950
        %952 = vmatprep.mubr.f32.mxu0 0.0
        %953 = vmatmul.mubr.f32.gmra.mrb[0].mxu0 %v756
        %v954 = vpop.f32.mrb[0].mxu0
        %v955 = vadd.f32 %v807, %v954
        %v956 = vpop.f32.mrb[0].mxu0
        %v957 = vadd.f32 %v807, %v956
        %958 = vmatprep.mubr.f32.mxu0 0.0
        %959 = vmatmul.mubr.f32.gmra.mrb[0].mxu0 %v757
        %v960 = vpop.f32.mrb[0].mxu0
        %v961 = vadd.f32 %v812, %v960
        %v962 = vpop.f32.mrb[0].mxu0
        %v963 = vadd.f32 %v812, %v962
        %964 = vmatprep.mubr.f32.mxu0 0.0
        %965 = vmatmul.mubr.f32.gmra.mrb[0].mxu0 %v758
        %v966 = vpop.f32.mrb[0].mxu0
        %v967 = vadd.f32 %v817, %v966
        %v968 = vpop.f32.mrb[0].mxu0
        %v969 = vadd.f32 %v817, %v968
        %970 = vmatprep.mubr.f32.mxu0 0.0
        %971 = vmatmul.mubr.f32.gmra.mrb[0].mxu0 %v759
        %v972 = vpop.f32.mrb[0].mxu0
        %v973 = vadd.f32 %v822, %v972
        %v974 = vpop.f32.mrb[0].mxu0
        %v975 = vadd.f32 %v822, %v974
        %976 = vmatprep.mubr.f32.mxu0 0.0
        %977 = vmatmul.mubr.f32.gmra.mrb[0].mxu0 %v760
        %v978 = vpop.f32.mrb[0].mxu0
        %v979 = vadd.f32 %v827, %v978
        %v980 = vpop.f32.mrb[0].mxu0
        %v981 = vadd.f32 %v827, %v980
        %982 = vmatprep.mubr.f32.mxu0 0.0
        %983 = vmatmul.mubr.f32.gmra.mrb[0].mxu0 %v761
        %v984 = vpop.f32.mrb[0].mxu0
        %v985 = vadd.f32 %v832, %v984
        %v986 = vpop.f32.mrb[0].mxu0
        %v987 = vadd.f32 %v832, %v986
        %988 = vmatprep.mubr.f32.mxu0 0.0
        %989 = vmatmul.mubr.f32.gmra.mrb[0].mxu0 %v762
        %v990 = vpop.f32.mrb[0].mxu0
        %v991 = vadd.f32 %v837, %v990
        %v992 = vpop.f32.mrb[0].mxu0
        %v993 = vadd.f32 %v837, %v992
        %994 = vmatprep.mubr.f32.mxu0 0.0
        %995 = vmatmul.mubr.f32.gmra.mrb[0].mxu0 %v763
        %v996 = vpop.f32.mrb[0].mxu0
        %v997 = vadd.f32 %v842, %v996
        %v998 = vpop.f32.mrb[0].mxu0
        %v999 = vadd.f32 %v842, %v998
        %1000 = vmatprep.mubr.f32.mxu0 0.0
        %1001 = vmatmul.mubr.f32.gmra.mrb[0].mxu0 %v764
        %v1002 = vpop.f32.mrb[0].mxu0
        %v1003 = vadd.f32 %v847, %v1002
        %v1004 = vpop.f32.mrb[0].mxu0
        %v1005 = vadd.f32 %v847, %v1004
        %1006 = vmatprep.mubr.f32.mxu0 0.0
        %1007 = vmatmul.mubr.f32.gmra.mrb[0].mxu0 %v765
        %v1008 = vpop.f32.mrb[0].mxu0
        %v1009 = vadd.f32 %v852, %v1008
        %v1010 = vpop.f32.mrb[0].mxu0
        %v1011 = vadd.f32 %v852, %v1010
        %1012 = vmatprep.mubr.f32.mxu0 0.0
        %1013 = vmatmul.mubr.f32.gmra.mrb[0].mxu0 %v766
        %v1014 = vpop.f32.mrb[0].mxu0
        %v1015 = vadd.f32 %v857, %v1014
        %v1016 = vpop.f32.mrb[0].mxu0
        %v1017 = vadd.f32 %v857, %v1016
        %1018 = vmatprep.mubr.f32.mxu0 0.0
        %1019 = vmatmul.mubr.f32.gmra.mrb[0].mxu0 %v767
        %v1020 = vpop.f32.mrb[0].mxu0
        %v1021 = vadd.f32 %v862, %v1020
        %v1022 = vpop.f32.mrb[0].mxu0
        %v1023 = vadd.f32 %v862, %v1022
        %1024 = vdwg.mxu0
        %v1025 = vtanh.pop %v931
        %v1026 = vtanh.pop %v933
        %v1027 = vtanh.pop %v937
        %v1028 = vtanh.pop %v939
        %v1029 = vtanh.pop %v943
        %v1030 = vtanh.pop %v945
        %v1031 = vtanh.pop %v949
        %v1032 = vtanh.pop %v951
        %v1033 = vtanh.pop %v955
        %v1034 = vtanh.pop %v957
        %v1035 = vtanh.pop %v961
        %v1036 = vtanh.pop %v963
        %v1037 = vtanh.pop %v967
        %v1038 = vtanh.pop %v969
        %v1039 = vtanh.pop %v973
        %v1040 = vtanh.pop %v975
        %v1041 = vtanh.pop %v979
        %v1042 = vtanh.pop %v981
        %v1043 = vtanh.pop %v985
        %v1044 = vtanh.pop %v987
        %v1045 = vtanh.pop %v991
        %v1046 = vtanh.pop %v993
        %v1047 = vtanh.pop %v997
        %v1048 = vtanh.pop %v999
        %v1049 = vtanh.pop %v1003
        %v1050 = vtanh.pop %v1005
        %v1051 = vtanh.pop %v1009
        %v1052 = vtanh.pop %v1011
        %v1053 = vtanh.pop %v1015
        %v1054 = vtanh.pop %v1017
        %v1055 = vtanh.pop %v1021
        %v1056 = vtanh.pop %v1023
        %v1057 = vld [vmem:[%s7] sm:$0xff]
        %v1058 = vld [vmem:[%s7 + $0x8] sm:$0xff]
        %v1059 = vld [vmem:[%s7 + $0x10] sm:$0xff]
        %v1060 = vld [vmem:[%s7 + $0x18] sm:$0xff]
        %v1061 = vld [vmem:[%s8] sm:$0xff]
        %v1062 = vld [vmem:[%s8 + $0x8] sm:$0xff]
        %v1063 = vld [vmem:[%s8 + $0x10] sm:$0xff]
        %v1064 = vld [vmem:[%s8 + $0x18] sm:$0xff]
        %1066 = vset.pattern.permute.xlu0 0
        %1067 = vperm.xlu0 %1066, %v1061
        %v1068 = vpop.permute.xlu0 %1067
        %1071 = vset.pattern.permute.xlu0 0
        %1072 = vperm.xlu0 %1071, %v1062
        %v1073 = vpop.permute.xlu0 %1072
        %1076 = vset.pattern.permute.xlu0 0
        %1077 = vperm.xlu0 %1076, %v1063
        %v1078 = vpop.permute.xlu0 %1077
        %1081 = vset.pattern.permute.xlu0 0
        %1082 = vperm.xlu0 %1081, %v1064
        %v1083 = vpop.permute.xlu0 %1082
        %1085 = vmatprep.subr.mxu0 %v1026
        %1086 = vmatpush1.msra.mxu0 %v1025
        %1087 = vmatprep.subr.mxu0 %v1028
        %1088 = vmatpush1.msra.mxu0 %v1027
        %1089 = vmatprep.subr.mxu0 %v1030
        %1090 = vmatpush1.msra.mxu0 %v1029
        %1091 = vmatprep.subr.mxu0 %v1032
        %1092 = vmatpush1.msra.mxu0 %v1031
        %1093 = vmatprep.subr.mxu0 %v1034
        %1094 = vmatpush1.msra.mxu0 %v1033
        %1095 = vmatprep.subr.mxu0 %v1036
        %1096 = vmatpush1.msra.mxu0 %v1035
        %1097 = vmatprep.subr.mxu0 %v1038
        %1098 = vmatpush1.msra.mxu0 %v1037
        %1099 = vmatprep.subr.mxu0 %v1040
        %1100 = vmatpush1.msra.mxu0 %v1039
        %1101 = vmatprep.subr.mxu0 %v1042
        %1102 = vmatpush1.msra.mxu0 %v1041
        %1103 = vmatprep.subr.mxu0 %v1044
        %1104 = vmatpush1.msra.mxu0 %v1043
        %1105 = vmatprep.subr.mxu0 %v1046
        %1106 = vmatpush1.msra.mxu0 %v1045
        %1107 = vmatprep.subr.mxu0 %v1048
        %1108 = vmatpush1.msra.mxu0 %v1047
        %1109 = vmatprep.subr.mxu0 %v1050
        %1110 = vmatpush1.msra.mxu0 %v1049
        %1111 = vmatprep.subr.mxu0 %v1052
        %1112 = vmatpush1.msra.mxu0 %v1051
        %1113 = vmatprep.subr.mxu0 %v1054
        %1114 = vmatpush1.msra.mxu0 %v1053
        %1115 = vmatprep.subr.mxu0 %v1056
        %1116 = vmatpush1.msra.mxu0 %v1055
        %1117 = vmatprep.subr.mxu0 0.0
        %1118 = vmatpush1.msra.mxu0 0.0
        %1119 = vmatprep.subr.mxu0 0.0
        %1120 = vmatpush1.msra.mxu0 0.0
        %1121 = vmatprep.subr.mxu0 0.0
        %1122 = vmatpush1.msra.mxu0 0.0
        %1123 = vmatprep.subr.mxu0 0.0
        %1124 = vmatpush1.msra.mxu0 0.0
        %1125 = vmatprep.subr.mxu0 0.0
        %1126 = vmatpush1.msra.mxu0 0.0
        %1127 = vmatprep.subr.mxu0 0.0
        %1128 = vmatpush1.msra.mxu0 0.0
        %1129 = vmatprep.subr.mxu0 0.0
        %1130 = vmatpush1.msra.mxu0 0.0
        %1131 = vmatprep.subr.mxu0 0.0
        %1132 = vmatpush1.msra.mxu0 0.0
        %1133 = vmatprep.subr.mxu0 0.0
        %1134 = vmatpush1.msra.mxu0 0.0
        %1135 = vmatprep.subr.mxu0 0.0
        %1136 = vmatpush1.msra.mxu0 0.0
        %1137 = vmatprep.subr.mxu0 0.0
        %1138 = vmatpush1.msra.mxu0 0.0
        %1139 = vmatprep.subr.mxu0 0.0
        %1140 = vmatpush1.msra.mxu0 0.0
        %1141 = vmatprep.subr.mxu0 0.0
        %1142 = vmatpush1.msra.mxu0 0.0
        %1143 = vmatprep.subr.mxu0 0.0
        %1144 = vmatpush1.msra.mxu0 0.0
        %1145 = vmatprep.subr.mxu0 0.0
        %1146 = vmatpush1.msra.mxu0 0.0
        %1147 = vmatprep.subr.mxu0 0.0
        %1148 = vmatpush1.msra.mxu0 0.0
        %1149 = vmatprep.mubr.f32.mxu0 0.0
        %1150 = vmatmul.mubr.f32.gmra.mrb[0].mxu0 %v1057
        %v1151 = vpop.f32.mrb[0].mxu0
        %v1152 = vadd.f32 %v1068, %v1151
        %v1153 = vpop.f32.mrb[0].mxu0
        %v1154 = vadd.f32 %v1068, %v1153
        %1155 = vmatprep.mubr.f32.mxu0 0.0
        %1156 = vmatmul.mubr.f32.gmra.mrb[0].mxu0 %v1058
        %v1157 = vpop.f32.mrb[0].mxu0
        %v1158 = vadd.f32 %v1073, %v1157
        %v1159 = vpop.f32.mrb[0].mxu0
        %v1160 = vadd.f32 %v1073, %v1159
        %1161 = vmatprep.mubr.f32.mxu0 0.0
        %1162 = vmatmul.mubr.f32.gmra.mrb[0].mxu0 %v1059
        %v1163 = vpop.f32.mrb[0].mxu0
        %v1164 = vadd.f32 %v1078, %v1163
        %v1165 = vpop.f32.mrb[0].mxu0
        %v1166 = vadd.f32 %v1078, %v1165
        %1167 = vmatprep.mubr.f32.mxu0 0.0
        %1168 = vmatmul.mubr.f32.gmra.mrb[0].mxu0 %v1060
        %v1169 = vpop.f32.mrb[0].mxu0
        %v1170 = vadd.f32 %v1083, %v1169
        %v1171 = vpop.f32.mrb[0].mxu0
        %v1172 = vadd.f32 %v1083, %v1171
        %1173 = vdwg.mxu0
        %1174 = vst [vmem:[%s326] sm:$0xff] %v1152
        %1175 = vst [vmem:[%s326 + $0x8] sm:$0xff] %v1154
        %1176 = vst [vmem:[%s326 + $0x10] sm:$0xff] %v1158
        %1177 = vst [vmem:[%s326 + $0x18] sm:$0xff] %v1160
        %1178 = vst [vmem:[%s326 + $0x20] sm:$0xff] %v1164
        %1179 = vst [vmem:[%s326 + $0x28] sm:$0xff] %v1166
        %1180 = vst [vmem:[%s326 + $0x30] sm:$0xff] %v1170
        %1181 = vst [vmem:[%s326 + $0x38] sm:$0xff] %v1172
        %s1182 = sand.u32 %s225, 1
        %s1183 = scalar_lea.sflag [#allocation3], %s1182
        %s1184 = sand.u32 %s225, 1
        %s1185 = smul.addr %s1184, 64
        %s1186 = scalar_lea.vmem [#allocation2], %s1185
        // Predicated region
        $region57: #{tpu_custom_call.1} parent=55 // pred_check
          %p1187 = pneg %p235
        $region58: #{tpu_custom_call.1} parent=55 // pred_check_branch
          %1189 = sbr.rel (%p1187) target = $region60
        $region59: #{tpu_custom_call.1} parent=55 // pred_region
          %s1190 = smul.u32 2, %s23
          %s1192 = ssub.s32 1024, 1024
          %1193 = vsyncadd %s1183, %s1192
          %s1194 = smul.addr %s1190, 128
          %s1195 = scalar_lea.hbm %s9, %s1194
          %s1196 = sshll.u32 %s1186, 4
          %s1197 = int_to_ptr.vmem [resolvable:$true] %s1196
          %1202 = dma.vmem_to_hbm [thread:$0]  %s1197, 1024, %s1195, %s1183, 256, 512, 16
        $region60: #{tpu_custom_call.1} parent=55 // pred_fallthru
          _
      $region56: #{tpu_custom_call.1} parent=5 // pred_fallthru
        _
      %p1203 = scmp.le.s32.totalorder 2, %s18
      // Predicated region
      $region61: #{tpu_custom_call.1} parent=5 // pred_check
        %p1204 = pneg %p1203
      $region62: #{tpu_custom_call.1} parent=5 // pred_check_branch
        %1206 = sbr.rel (%p1204) target = $region64
      $region63: #{tpu_custom_call.1} parent=5 // pred_region
        %s1207 = ssub.s32 %s18, 2
        // Predicated region
        $region65: #{tpu_custom_call.1} parent=63 // pred_check
          %p1208 = pneg %p241
        $region66: #{tpu_custom_call.1} parent=63 // pred_check_branch
          %1210 = sbr.rel (%p1208) target = $region68
        $region67: #{tpu_custom_call.1} parent=63 // pred_region
          %s1211 = sand.u32 %s226, 1
          %s1212 = scalar_lea.sflag [#allocation3], %s1211
          %s1213 = sand.u32 %s226, 1
          %s1214 = smul.addr %s1213, 64
          %s1215 = scalar_lea.vmem [#allocation2], %s1214
          %1216 = dma.done %s1212, 1024
        $region68: #{tpu_custom_call.1} parent=63 // pred_fallthru
          _
      $region64: #{tpu_custom_call.1} parent=5 // pred_fallthru
        _
    $region6: #{tpu_custom_call.1} parent=1 // loop_footer
      %s22 = sadd.s32 1, %s18
    $region7: #{tpu_custom_call.1} parent=1 // loop_footer_branch
      %17 = sbr.rel target = $region3
    $region8: #{tpu_custom_call.1} parent=1 // loop_exit
      _
    %1217 = vsyncpa [#allocation3], 1
    %s1218 = scalar_lea.sflag [#allocation3], 1
    %1219 = vsyncpa %s1218, 1

</llo_original>
